<compile_context>
chip_gen: v5e
topology: v5e:2x2
jax: 0.10.0
libtpu: 0.0.40
codegen_flags: <defaults>
</compile_context>

<pallas_src>
import jax
import jax.numpy as jnp
from jax.experimental import pallas as pl
from jax.experimental.pallas import tpu as pltpu


def gru_tagger_kernel(x_ref, wih_ref, whh_ref, bi_ref, bhn_ref,
                      wout_ref, bout_ref, out_ref):
    """One sentence per grid step.

    x_ref    : (1, S, E)  bf16 embedded tokens for sentence `b`
    wih_ref  : (E, 3H)    bf16 fused input->gate weights, gate order [r, z, n]
    whh_ref  : (H, 3H)    bf16 fused hidden->gate weights
    bi_ref   : (1, 3H)    f32  b_ih (all gates) + b_hh (r, z only; folded)
    bhn_ref  : (1, H)     f32  b_hh for n (must stay inside the r-gated term)
    wout_ref : (H, T)     bf16 tag projection (transposed)
    bout_ref : (1, T)     f32  tag bias
    out_ref  : (1, S, T)  f32  log-softmax tag scores
    """
    S = x_ref.shape[1]
    H = whh_ref.shape[0]

    x = x_ref[0]                                                       # (S, E) bf16
    whh = whh_ref[...]                                                 # (H, 3H) bf16
    bh_n = bhn_ref[...]                                                # (1, H) f32

    # Hoisted, fused input->gate projection: one MXU matmul + one bias add.
    # Result stays in vregs (S*3H is tiny), no VMEM scratch.
    gi = jnp.dot(x, wih_ref[...],
                 preferred_element_type=jnp.float32) + bi_ref[...]     # (S, 3H) f32

    # Serial recurrence, fully unrolled (S small & static).  One fused
    # (1,H)@(H,3H) matmul per step; h and per-step outputs carried in vregs
    # (no per-step masked VMEM stores).  Gating math stays in f32 (v5e-safe).
    h = jnp.zeros((1, H), jnp.float32)                                 # PyTorch h0 = 0
    hs = []
    for t in range(S):
        gi_t = gi[t:t + 1, :]                                          # (1, 3H)
        gh = jnp.dot(h.astype(jnp.bfloat16), whh,
                     preferred_element_type=jnp.float32)               # (1, 3H)
        r = jax.nn.sigmoid(gi_t[:, 0:H] + gh[:, 0:H])
        z = jax.nn.sigmoid(gi_t[:, H:2 * H] + gh[:, H:2 * H])
        n = jnp.tanh(gi_t[:, 2 * H:3 * H] + r * (gh[:, 2 * H:3 * H] + bh_n))
        h = (1.0 - z) * n + z * h                                      # (1, H) f32
        hs.append(h)

    hs_all = jnp.concatenate(hs, axis=0)                               # (S, H) f32

    # Hoisted tag head: one (S,H)@(H,T) matmul + batched log-softmax,
    # single dense (S,T) store.
    logits = jnp.dot(hs_all.astype(jnp.bfloat16), wout_ref[...],
                     preferred_element_type=jnp.float32) + bout_ref[...]   # (S, T)
    m = jnp.max(logits, axis=-1, keepdims=True)
    lse = jnp.log(jnp.sum(jnp.exp(logits - m), axis=-1, keepdims=True)) + m
    out_ref[0] = logits - lse


def prepack_params(params):
    """One-time weight packing: transpose, fuse gates, fold biases, bf16 cast."""
    H = params["w_hh"].shape[1]
    # Fold b_hh's r/z components into the hoisted bias; b_hh_n must stay
    # separate (it sits inside the r-gated term).
    bi = params["b_ih"] + jnp.concatenate(
        [params["b_hh"][:2 * H], jnp.zeros((H,), jnp.float32)])
    return {
        "emb": params["embedding"].astype(jnp.bfloat16),               # (V, E)
        "wih": params["w_ih"].T.astype(jnp.bfloat16),                  # (E, 3H)
        "whh": params["w_hh"].T.astype(jnp.bfloat16),                  # (H, 3H)
        "bi": bi.reshape(1, 3 * H),                                    # (1, 3H) f32
        "bh_n": params["b_hh"][2 * H:].reshape(1, H),                  # (1, H)  f32
        "wout": params["w_out"].T.astype(jnp.bfloat16),                # (H, T)
        "bout": params["b_out"].reshape(1, -1),                        # (1, T)  f32
    }


def gru_tagger_forward(sentence, packed):
    """sentence: (S,) or (B, S) int32 token ids.
    Returns (S, T) or (B, S, T) float32 log-softmax tag scores."""
    single = sentence.ndim == 1
    ids = sentence[None, :] if single else sentence                    # (B, S)
    emb = jnp.take(packed["emb"], ids, axis=0)                         # (B, S, E) glue gather
    B, S, E = emb.shape
    H = packed["whh"].shape[0]
    T = packed["wout"].shape[1]

    out = pl.pallas_call(
        gru_tagger_kernel,
        out_shape=jax.ShapeDtypeStruct((B, S, T), jnp.float32),
        grid=(B,),
        in_specs=[
            pl.BlockSpec((1, S, E), lambda b: (b, 0, 0)),              # per-sentence block
            pl.BlockSpec((E, 3 * H), lambda b: (0, 0)),                # weights: same block
            pl.BlockSpec((H, 3 * H), lambda b: (0, 0)),                #   every grid step
            pl.BlockSpec((1, 3 * H), lambda b: (0, 0)),
            pl.BlockSpec((1, H), lambda b: (0, 0)),
            pl.BlockSpec((H, T), lambda b: (0, 0)),
            pl.BlockSpec((1, T), lambda b: (0, 0)),
        ],
        out_specs=pl.BlockSpec((1, S, T), lambda b: (b, 0, 0)),
        compiler_params=pltpu.CompilerParams(
            dimension_semantics=("parallel",)),   # v7x: sentences across both TCs
    )(emb, packed["wih"], packed["whh"], packed["bi"], packed["bh_n"],
      packed["wout"], packed["bout"])

    return out[0] if single else out


def gru_tagger_reference(sentence, params):
    """Pure-JAX f32 reference mirroring the PyTorch forward."""
    emb = jnp.take(params["embedding"], sentence, axis=0)
    H = params["w_hh"].shape[1]

    def cell(h, x):
        gi = x @ params["w_ih"].T + params["b_ih"]
        gh = h @ params["w_hh"].T + params["b_hh"]
        i_r, i_z, i_n = gi[0:H], gi[H:2 * H], gi[2 * H:3 * H]
        h_r, h_z, h_n = gh[0:H], gh[H:2 * H], gh[2 * H:3 * H]
        r = jax.nn.sigmoid(i_r + h_r)
        z = jax.nn.sigmoid(i_z + h_z)
        n = jnp.tanh(i_n + r * h_n)
        h_new = (1.0 - z) * n + z * h
        return h_new, h_new

    _, hs = jax.lax.scan(cell, jnp.zeros((H,), jnp.float32), emb)
    logits = hs @ params["w_out"].T + params["b_out"]
    return jax.nn.log_softmax(logits, axis=1)


def init_params(key, embedding_dim, hidden_dim, vocab_size, tagset_size):
    ks = jax.random.split(key, 7)
    s = 1.0 / jnp.sqrt(hidden_dim)
    return {
        "embedding": jax.random.normal(ks[0], (vocab_size, embedding_dim), jnp.float32),
        "w_ih": jax.random.uniform(ks[1], (3 * hidden_dim, embedding_dim), jnp.float32, -s, s),
        "w_hh": jax.random.uniform(ks[2], (3 * hidden_dim, hidden_dim), jnp.float32, -s, s),
        "b_ih": jax.random.uniform(ks[3], (3 * hidden_dim,), jnp.float32, -s, s),
        "b_hh": jax.random.uniform(ks[4], (3 * hidden_dim,), jnp.float32, -s, s),
        "w_out": jax.random.uniform(ks[5], (tagset_size, hidden_dim), jnp.float32, -s, s),
        "b_out": jax.random.uniform(ks[6], (tagset_size,), jnp.float32, -s, s),
    }


if __name__ == "__main__":
    EMBED_DIM, HIDDEN_DIM, VOCAB, TAGSET, SEQ, BATCH = 32, 32, 20, 8, 8, 2

    key = jax.random.PRNGKey(0)
    pkey, skey = jax.random.split(key)
    params = init_params(pkey, EMBED_DIM, HIDDEN_DIM, VOCAB, TAGSET)
    packed = prepack_params(params)                       # one-time weight packing
    sentences = jax.random.randint(skey, (BATCH, SEQ), 0, VOCAB, dtype=jnp.int32)

    # Batched path (grid over sentences, "parallel" for v7x's 2 TensorCores).
    out = jax.block_until_ready(gru_tagger_forward(sentences, packed))
    assert out.shape == (BATCH, SEQ, TAGSET)

    ref = jnp.stack([gru_tagger_reference(sentences[b], params)
                     for b in range(BATCH)])
    err = float(jnp.max(jnp.abs(out - ref)))
    # Tolerance relaxed vs. the pure-f32 reference because matmul operands are
    # bf16 (per perf review); f32 accumulation + f32 gating keep it ~1e-2.
    assert err < 5e-2, f"batched max abs err {err}"

    # Single-sentence path (original module semantics: one sentence at a time).
    out1 = jax.block_until_ready(gru_tagger_forward(sentences[0], packed))
    assert out1.shape == (SEQ, TAGSET)
    err1 = float(jnp.max(jnp.abs(out1 - ref[0])))
    assert err1 < 5e-2, f"single max abs err {err1}"

    print("KERNEL_OK")
</pallas_src>

<mosaic_0001>
module attributes {stable_mosaic.version = 11 : i64} {
  func.func @gru_tagger_kernel(%arg0: i32, %arg1: memref<1x8x32xbf16, #tpu.memory_space<vmem>>, %arg2: memref<32x96xbf16, #tpu.memory_space<vmem>>, %arg3: memref<32x96xbf16, #tpu.memory_space<vmem>>, %arg4: memref<1x96xf32, #tpu.memory_space<vmem>>, %arg5: memref<1x32xf32, #tpu.memory_space<vmem>>, %arg6: memref<32x8xbf16, #tpu.memory_space<vmem>>, %arg7: memref<1x8xf32, #tpu.memory_space<vmem>>, %arg8: memref<1x8x8xf32, #tpu.memory_space<vmem>>) attributes {dimension_semantics = [#tpu.dimension_semantics<parallel>], iteration_bounds = array<i64: 2>, scalar_prefetch = 0 : i64, scratch_operands = 0 : i64, tpu.core_type = #tpu.core_type<tc>, window_params = [{transform_indices = @transform_0, window_bounds = array<i64: 1, 8, 32>}, {pipeline_mode = #tpu.pipeline_mode<synchronous>, transform_indices = @transform_1, window_bounds = array<i64: 32, 96>}, {pipeline_mode = #tpu.pipeline_mode<synchronous>, transform_indices = @transform_2, window_bounds = array<i64: 32, 96>}, {pipeline_mode = #tpu.pipeline_mode<synchronous>, transform_indices = @transform_3, window_bounds = array<i64: 1, 96>}, {pipeline_mode = #tpu.pipeline_mode<synchronous>, transform_indices = @transform_4, window_bounds = array<i64: 1, 32>}, {pipeline_mode = #tpu.pipeline_mode<synchronous>, transform_indices = @transform_5, window_bounds = array<i64: 32, 8>}, {pipeline_mode = #tpu.pipeline_mode<synchronous>, transform_indices = @transform_6, window_bounds = array<i64: 1, 8>}, {transform_indices = @transform_7, window_bounds = array<i64: 1, 8, 8>}]} {
    %c0 = arith.constant 0 : index
    %c0_0 = arith.constant 0 : index
    %c0_1 = arith.constant 0 : index
    %0 = vector.load %arg1[%c0, %c0_0, %c0_1] : memref<1x8x32xbf16, #tpu.memory_space<vmem>>, vector<1x8x32xbf16>
    %1 = vector.shape_cast %0 : vector<1x8x32xbf16> to vector<8x32xbf16>
    %c0_2 = arith.constant 0 : index
    %c0_3 = arith.constant 0 : index
    %2 = vector.load %arg3[%c0_2, %c0_3] : memref<32x96xbf16, #tpu.memory_space<vmem>>, vector<32x96xbf16>
    %c0_4 = arith.constant 0 : index
    %c0_5 = arith.constant 0 : index
    %3 = vector.load %arg5[%c0_4, %c0_5] : memref<1x32xf32, #tpu.memory_space<vmem>>, vector<1x32xf32>
    %c0_6 = arith.constant 0 : index
    %c0_7 = arith.constant 0 : index
    %4 = vector.load %arg2[%c0_6, %c0_7] : memref<32x96xbf16, #tpu.memory_space<vmem>>, vector<32x96xbf16>
    %cst = arith.constant dense<0.000000e+00> : vector<8x96xf32>
    %5 = tpu.matmul %1, %4, %cst {dimension_numbers = #tpu.dot_dimension_numbers<[1], [0], [0], [1], [0, 0, 1, 1], [], []>} : vector<8x32xbf16>, vector<32x96xbf16>, vector<8x96xf32> -> vector<8x96xf32>
    %c0_8 = arith.constant 0 : index
    %c0_9 = arith.constant 0 : index
    %6 = vector.load %arg4[%c0_8, %c0_9] : memref<1x96xf32, #tpu.memory_space<vmem>>, vector<1x96xf32>
    %7 = vector.broadcast %6 : vector<1x96xf32> to vector<8x96xf32>
    %8 = arith.addf %5, %7 : vector<8x96xf32>
    %cst_10 = arith.constant 0.000000e+00 : f32
    %9 = vector.broadcast %cst_10 : f32 to vector<1x32xf32>
    %10 = vector.extract_strided_slice %8 {offsets = [0, 0], sizes = [1, 96], strides = [1, 1]} : vector<8x96xf32> to vector<1x96xf32>
    %11 = arith.truncf %9 : vector<1x32xf32> to vector<1x32xbf16>
    %cst_11 = arith.constant dense<0.000000e+00> : vector<1x96xf32>
    %12 = tpu.matmul %11, %2, %cst_11 {dimension_numbers = #tpu.dot_dimension_numbers<[1], [0], [0], [1], [0, 0, 1, 1], [], []>} : vector<1x32xbf16>, vector<32x96xbf16>, vector<1x96xf32> -> vector<1x96xf32>
    %13 = vector.extract_strided_slice %10 {offsets = [0, 0], sizes = [1, 32], strides = [1, 1]} : vector<1x96xf32> to vector<1x32xf32>
    %14 = vector.extract_strided_slice %12 {offsets = [0, 0], sizes = [1, 32], strides = [1, 1]} : vector<1x96xf32> to vector<1x32xf32>
    %15 = arith.addf %13, %14 : vector<1x32xf32>
    %16 = arith.negf %15 : vector<1x32xf32>
    %17 = math.exp %16 : vector<1x32xf32>
    %cst_12 = arith.constant 1.000000e+00 : f32
    %18 = vector.broadcast %cst_12 : f32 to vector<1x32xf32>
    %19 = arith.addf %18, %17 : vector<1x32xf32>
    %20 = arith.divf %18, %19 : vector<1x32xf32>
    %21 = vector.extract_strided_slice %10 {offsets = [0, 32], sizes = [1, 32], strides = [1, 1]} : vector<1x96xf32> to vector<1x32xf32>
    %22 = vector.extract_strided_slice %12 {offsets = [0, 32], sizes = [1, 32], strides = [1, 1]} : vector<1x96xf32> to vector<1x32xf32>
    %23 = arith.addf %21, %22 : vector<1x32xf32>
    %24 = arith.negf %23 : vector<1x32xf32>
    %25 = math.exp %24 : vector<1x32xf32>
    %cst_13 = arith.constant 1.000000e+00 : f32
    %26 = vector.broadcast %cst_13 : f32 to vector<1x32xf32>
    %27 = arith.addf %26, %25 : vector<1x32xf32>
    %28 = arith.divf %26, %27 : vector<1x32xf32>
    %29 = vector.extract_strided_slice %10 {offsets = [0, 64], sizes = [1, 32], strides = [1, 1]} : vector<1x96xf32> to vector<1x32xf32>
    %30 = vector.extract_strided_slice %12 {offsets = [0, 64], sizes = [1, 32], strides = [1, 1]} : vector<1x96xf32> to vector<1x32xf32>
    %31 = arith.addf %30, %3 : vector<1x32xf32>
    %32 = arith.mulf %20, %31 : vector<1x32xf32>
    %33 = arith.addf %29, %32 : vector<1x32xf32>
    %34 = math.tanh %33 : vector<1x32xf32>
    %cst_14 = arith.constant 1.000000e+00 : f32
    %35 = vector.broadcast %cst_14 : f32 to vector<1x32xf32>
    %36 = arith.subf %35, %28 : vector<1x32xf32>
    %37 = arith.mulf %36, %34 : vector<1x32xf32>
    %38 = arith.mulf %28, %9 : vector<1x32xf32>
    %39 = arith.addf %37, %38 : vector<1x32xf32>
    %40 = vector.extract_strided_slice %8 {offsets = [1, 0], sizes = [1, 96], strides = [1, 1]} : vector<8x96xf32> to vector<1x96xf32>
    %41 = arith.truncf %39 : vector<1x32xf32> to vector<1x32xbf16>
    %cst_15 = arith.constant dense<0.000000e+00> : vector<1x96xf32>
    %42 = tpu.matmul %41, %2, %cst_15 {dimension_numbers = #tpu.dot_dimension_numbers<[1], [0], [0], [1], [0, 0, 1, 1], [], []>} : vector<1x32xbf16>, vector<32x96xbf16>, vector<1x96xf32> -> vector<1x96xf32>
    %43 = vector.extract_strided_slice %40 {offsets = [0, 0], sizes = [1, 32], strides = [1, 1]} : vector<1x96xf32> to vector<1x32xf32>
    %44 = vector.extract_strided_slice %42 {offsets = [0, 0], sizes = [1, 32], strides = [1, 1]} : vector<1x96xf32> to vector<1x32xf32>
    %45 = arith.addf %43, %44 : vector<1x32xf32>
    %46 = arith.negf %45 : vector<1x32xf32>
    %47 = math.exp %46 : vector<1x32xf32>
    %cst_16 = arith.constant 1.000000e+00 : f32
    %48 = vector.broadcast %cst_16 : f32 to vector<1x32xf32>
    %49 = arith.addf %48, %47 : vector<1x32xf32>
    %50 = arith.divf %48, %49 : vector<1x32xf32>
    %51 = vector.extract_strided_slice %40 {offsets = [0, 32], sizes = [1, 32], strides = [1, 1]} : vector<1x96xf32> to vector<1x32xf32>
    %52 = vector.extract_strided_slice %42 {offsets = [0, 32], sizes = [1, 32], strides = [1, 1]} : vector<1x96xf32> to vector<1x32xf32>
    %53 = arith.addf %51, %52 : vector<1x32xf32>
    %54 = arith.negf %53 : vector<1x32xf32>
    %55 = math.exp %54 : vector<1x32xf32>
    %cst_17 = arith.constant 1.000000e+00 : f32
    %56 = vector.broadcast %cst_17 : f32 to vector<1x32xf32>
    %57 = arith.addf %56, %55 : vector<1x32xf32>
    %58 = arith.divf %56, %57 : vector<1x32xf32>
    %59 = vector.extract_strided_slice %40 {offsets = [0, 64], sizes = [1, 32], strides = [1, 1]} : vector<1x96xf32> to vector<1x32xf32>
    %60 = vector.extract_strided_slice %42 {offsets = [0, 64], sizes = [1, 32], strides = [1, 1]} : vector<1x96xf32> to vector<1x32xf32>
    %61 = arith.addf %60, %3 : vector<1x32xf32>
    %62 = arith.mulf %50, %61 : vector<1x32xf32>
    %63 = arith.addf %59, %62 : vector<1x32xf32>
    %64 = math.tanh %63 : vector<1x32xf32>
    %cst_18 = arith.constant 1.000000e+00 : f32
    %65 = vector.broadcast %cst_18 : f32 to vector<1x32xf32>
    %66 = arith.subf %65, %58 : vector<1x32xf32>
    %67 = arith.mulf %66, %64 : vector<1x32xf32>
    %68 = arith.mulf %58, %39 : vector<1x32xf32>
    %69 = arith.addf %67, %68 : vector<1x32xf32>
    %70 = vector.extract_strided_slice %8 {offsets = [2, 0], sizes = [1, 96], strides = [1, 1]} : vector<8x96xf32> to vector<1x96xf32>
    %71 = arith.truncf %69 : vector<1x32xf32> to vector<1x32xbf16>
    %cst_19 = arith.constant dense<0.000000e+00> : vector<1x96xf32>
    %72 = tpu.matmul %71, %2, %cst_19 {dimension_numbers = #tpu.dot_dimension_numbers<[1], [0], [0], [1], [0, 0, 1, 1], [], []>} : vector<1x32xbf16>, vector<32x96xbf16>, vector<1x96xf32> -> vector<1x96xf32>
    %73 = vector.extract_strided_slice %70 {offsets = [0, 0], sizes = [1, 32], strides = [1, 1]} : vector<1x96xf32> to vector<1x32xf32>
    %74 = vector.extract_strided_slice %72 {offsets = [0, 0], sizes = [1, 32], strides = [1, 1]} : vector<1x96xf32> to vector<1x32xf32>
    %75 = arith.addf %73, %74 : vector<1x32xf32>
    %76 = arith.negf %75 : vector<1x32xf32>
    %77 = math.exp %76 : vector<1x32xf32>
    %cst_20 = arith.constant 1.000000e+00 : f32
    %78 = vector.broadcast %cst_20 : f32 to vector<1x32xf32>
    %79 = arith.addf %78, %77 : vector<1x32xf32>
    %80 = arith.divf %78, %79 : vector<1x32xf32>
    %81 = vector.extract_strided_slice %70 {offsets = [0, 32], sizes = [1, 32], strides = [1, 1]} : vector<1x96xf32> to vector<1x32xf32>
    %82 = vector.extract_strided_slice %72 {offsets = [0, 32], sizes = [1, 32], strides = [1, 1]} : vector<1x96xf32> to vector<1x32xf32>
    %83 = arith.addf %81, %82 : vector<1x32xf32>
    %84 = arith.negf %83 : vector<1x32xf32>
    %85 = math.exp %84 : vector<1x32xf32>
    %cst_21 = arith.constant 1.000000e+00 : f32
    %86 = vector.broadcast %cst_21 : f32 to vector<1x32xf32>
    %87 = arith.addf %86, %85 : vector<1x32xf32>
    %88 = arith.divf %86, %87 : vector<1x32xf32>
    %89 = vector.extract_strided_slice %70 {offsets = [0, 64], sizes = [1, 32], strides = [1, 1]} : vector<1x96xf32> to vector<1x32xf32>
    %90 = vector.extract_strided_slice %72 {offsets = [0, 64], sizes = [1, 32], strides = [1, 1]} : vector<1x96xf32> to vector<1x32xf32>
    %91 = arith.addf %90, %3 : vector<1x32xf32>
    %92 = arith.mulf %80, %91 : vector<1x32xf32>
    %93 = arith.addf %89, %92 : vector<1x32xf32>
    %94 = math.tanh %93 : vector<1x32xf32>
    %cst_22 = arith.constant 1.000000e+00 : f32
    %95 = vector.broadcast %cst_22 : f32 to vector<1x32xf32>
    %96 = arith.subf %95, %88 : vector<1x32xf32>
    %97 = arith.mulf %96, %94 : vector<1x32xf32>
    %98 = arith.mulf %88, %69 : vector<1x32xf32>
    %99 = arith.addf %97, %98 : vector<1x32xf32>
    %100 = vector.extract_strided_slice %8 {offsets = [3, 0], sizes = [1, 96], strides = [1, 1]} : vector<8x96xf32> to vector<1x96xf32>
    %101 = arith.truncf %99 : vector<1x32xf32> to vector<1x32xbf16>
    %cst_23 = arith.constant dense<0.000000e+00> : vector<1x96xf32>
    %102 = tpu.matmul %101, %2, %cst_23 {dimension_numbers = #tpu.dot_dimension_numbers<[1], [0], [0], [1], [0, 0, 1, 1], [], []>} : vector<1x32xbf16>, vector<32x96xbf16>, vector<1x96xf32> -> vector<1x96xf32>
    %103 = vector.extract_strided_slice %100 {offsets = [0, 0], sizes = [1, 32], strides = [1, 1]} : vector<1x96xf32> to vector<1x32xf32>
    %104 = vector.extract_strided_slice %102 {offsets = [0, 0], sizes = [1, 32], strides = [1, 1]} : vector<1x96xf32> to vector<1x32xf32>
    %105 = arith.addf %103, %104 : vector<1x32xf32>
    %106 = arith.negf %105 : vector<1x32xf32>
    %107 = math.exp %106 : vector<1x32xf32>
    %cst_24 = arith.constant 1.000000e+00 : f32
    %108 = vector.broadcast %cst_24 : f32 to vector<1x32xf32>
    %109 = arith.addf %108, %107 : vector<1x32xf32>
    %110 = arith.divf %108, %109 : vector<1x32xf32>
    %111 = vector.extract_strided_slice %100 {offsets = [0, 32], sizes = [1, 32], strides = [1, 1]} : vector<1x96xf32> to vector<1x32xf32>
    %112 = vector.extract_strided_slice %102 {offsets = [0, 32], sizes = [1, 32], strides = [1, 1]} : vector<1x96xf32> to vector<1x32xf32>
    %113 = arith.addf %111, %112 : vector<1x32xf32>
    %114 = arith.negf %113 : vector<1x32xf32>
    %115 = math.exp %114 : vector<1x32xf32>
    %cst_25 = arith.constant 1.000000e+00 : f32
    %116 = vector.broadcast %cst_25 : f32 to vector<1x32xf32>
    %117 = arith.addf %116, %115 : vector<1x32xf32>
    %118 = arith.divf %116, %117 : vector<1x32xf32>
    %119 = vector.extract_strided_slice %100 {offsets = [0, 64], sizes = [1, 32], strides = [1, 1]} : vector<1x96xf32> to vector<1x32xf32>
    %120 = vector.extract_strided_slice %102 {offsets = [0, 64], sizes = [1, 32], strides = [1, 1]} : vector<1x96xf32> to vector<1x32xf32>
    %121 = arith.addf %120, %3 : vector<1x32xf32>
    %122 = arith.mulf %110, %121 : vector<1x32xf32>
    %123 = arith.addf %119, %122 : vector<1x32xf32>
    %124 = math.tanh %123 : vector<1x32xf32>
    %cst_26 = arith.constant 1.000000e+00 : f32
    %125 = vector.broadcast %cst_26 : f32 to vector<1x32xf32>
    %126 = arith.subf %125, %118 : vector<1x32xf32>
    %127 = arith.mulf %126, %124 : vector<1x32xf32>
    %128 = arith.mulf %118, %99 : vector<1x32xf32>
    %129 = arith.addf %127, %128 : vector<1x32xf32>
    %130 = vector.extract_strided_slice %8 {offsets = [4, 0], sizes = [1, 96], strides = [1, 1]} : vector<8x96xf32> to vector<1x96xf32>
    %131 = arith.truncf %129 : vector<1x32xf32> to vector<1x32xbf16>
    %cst_27 = arith.constant dense<0.000000e+00> : vector<1x96xf32>
    %132 = tpu.matmul %131, %2, %cst_27 {dimension_numbers = #tpu.dot_dimension_numbers<[1], [0], [0], [1], [0, 0, 1, 1], [], []>} : vector<1x32xbf16>, vector<32x96xbf16>, vector<1x96xf32> -> vector<1x96xf32>
    %133 = vector.extract_strided_slice %130 {offsets = [0, 0], sizes = [1, 32], strides = [1, 1]} : vector<1x96xf32> to vector<1x32xf32>
    %134 = vector.extract_strided_slice %132 {offsets = [0, 0], sizes = [1, 32], strides = [1, 1]} : vector<1x96xf32> to vector<1x32xf32>
    %135 = arith.addf %133, %134 : vector<1x32xf32>
    %136 = arith.negf %135 : vector<1x32xf32>
    %137 = math.exp %136 : vector<1x32xf32>
    %cst_28 = arith.constant 1.000000e+00 : f32
    %138 = vector.broadcast %cst_28 : f32 to vector<1x32xf32>
    %139 = arith.addf %138, %137 : vector<1x32xf32>
    %140 = arith.divf %138, %139 : vector<1x32xf32>
    %141 = vector.extract_strided_slice %130 {offsets = [0, 32], sizes = [1, 32], strides = [1, 1]} : vector<1x96xf32> to vector<1x32xf32>
    %142 = vector.extract_strided_slice %132 {offsets = [0, 32], sizes = [1, 32], strides = [1, 1]} : vector<1x96xf32> to vector<1x32xf32>
    %143 = arith.addf %141, %142 : vector<1x32xf32>
    %144 = arith.negf %143 : vector<1x32xf32>
    %145 = math.exp %144 : vector<1x32xf32>
    %cst_29 = arith.constant 1.000000e+00 : f32
    %146 = vector.broadcast %cst_29 : f32 to vector<1x32xf32>
    %147 = arith.addf %146, %145 : vector<1x32xf32>
    %148 = arith.divf %146, %147 : vector<1x32xf32>
    %149 = vector.extract_strided_slice %130 {offsets = [0, 64], sizes = [1, 32], strides = [1, 1]} : vector<1x96xf32> to vector<1x32xf32>
    %150 = vector.extract_strided_slice %132 {offsets = [0, 64], sizes = [1, 32], strides = [1, 1]} : vector<1x96xf32> to vector<1x32xf32>
    %151 = arith.addf %150, %3 : vector<1x32xf32>
    %152 = arith.mulf %140, %151 : vector<1x32xf32>
    %153 = arith.addf %149, %152 : vector<1x32xf32>
    %154 = math.tanh %153 : vector<1x32xf32>
    %cst_30 = arith.constant 1.000000e+00 : f32
    %155 = vector.broadcast %cst_30 : f32 to vector<1x32xf32>
    %156 = arith.subf %155, %148 : vector<1x32xf32>
    %157 = arith.mulf %156, %154 : vector<1x32xf32>
    %158 = arith.mulf %148, %129 : vector<1x32xf32>
    %159 = arith.addf %157, %158 : vector<1x32xf32>
    %160 = vector.extract_strided_slice %8 {offsets = [5, 0], sizes = [1, 96], strides = [1, 1]} : vector<8x96xf32> to vector<1x96xf32>
    %161 = arith.truncf %159 : vector<1x32xf32> to vector<1x32xbf16>
    %cst_31 = arith.constant dense<0.000000e+00> : vector<1x96xf32>
    %162 = tpu.matmul %161, %2, %cst_31 {dimension_numbers = #tpu.dot_dimension_numbers<[1], [0], [0], [1], [0, 0, 1, 1], [], []>} : vector<1x32xbf16>, vector<32x96xbf16>, vector<1x96xf32> -> vector<1x96xf32>
    %163 = vector.extract_strided_slice %160 {offsets = [0, 0], sizes = [1, 32], strides = [1, 1]} : vector<1x96xf32> to vector<1x32xf32>
    %164 = vector.extract_strided_slice %162 {offsets = [0, 0], sizes = [1, 32], strides = [1, 1]} : vector<1x96xf32> to vector<1x32xf32>
    %165 = arith.addf %163, %164 : vector<1x32xf32>
    %166 = arith.negf %165 : vector<1x32xf32>
    %167 = math.exp %166 : vector<1x32xf32>
    %cst_32 = arith.constant 1.000000e+00 : f32
    %168 = vector.broadcast %cst_32 : f32 to vector<1x32xf32>
    %169 = arith.addf %168, %167 : vector<1x32xf32>
    %170 = arith.divf %168, %169 : vector<1x32xf32>
    %171 = vector.extract_strided_slice %160 {offsets = [0, 32], sizes = [1, 32], strides = [1, 1]} : vector<1x96xf32> to vector<1x32xf32>
    %172 = vector.extract_strided_slice %162 {offsets = [0, 32], sizes = [1, 32], strides = [1, 1]} : vector<1x96xf32> to vector<1x32xf32>
    %173 = arith.addf %171, %172 : vector<1x32xf32>
    %174 = arith.negf %173 : vector<1x32xf32>
    %175 = math.exp %174 : vector<1x32xf32>
    %cst_33 = arith.constant 1.000000e+00 : f32
    %176 = vector.broadcast %cst_33 : f32 to vector<1x32xf32>
    %177 = arith.addf %176, %175 : vector<1x32xf32>
    %178 = arith.divf %176, %177 : vector<1x32xf32>
    %179 = vector.extract_strided_slice %160 {offsets = [0, 64], sizes = [1, 32], strides = [1, 1]} : vector<1x96xf32> to vector<1x32xf32>
    %180 = vector.extract_strided_slice %162 {offsets = [0, 64], sizes = [1, 32], strides = [1, 1]} : vector<1x96xf32> to vector<1x32xf32>
    %181 = arith.addf %180, %3 : vector<1x32xf32>
    %182 = arith.mulf %170, %181 : vector<1x32xf32>
    %183 = arith.addf %179, %182 : vector<1x32xf32>
    %184 = math.tanh %183 : vector<1x32xf32>
    %cst_34 = arith.constant 1.000000e+00 : f32
    %185 = vector.broadcast %cst_34 : f32 to vector<1x32xf32>
    %186 = arith.subf %185, %178 : vector<1x32xf32>
    %187 = arith.mulf %186, %184 : vector<1x32xf32>
    %188 = arith.mulf %178, %159 : vector<1x32xf32>
    %189 = arith.addf %187, %188 : vector<1x32xf32>
    %190 = vector.extract_strided_slice %8 {offsets = [6, 0], sizes = [1, 96], strides = [1, 1]} : vector<8x96xf32> to vector<1x96xf32>
    %191 = arith.truncf %189 : vector<1x32xf32> to vector<1x32xbf16>
    %cst_35 = arith.constant dense<0.000000e+00> : vector<1x96xf32>
    %192 = tpu.matmul %191, %2, %cst_35 {dimension_numbers = #tpu.dot_dimension_numbers<[1], [0], [0], [1], [0, 0, 1, 1], [], []>} : vector<1x32xbf16>, vector<32x96xbf16>, vector<1x96xf32> -> vector<1x96xf32>
    %193 = vector.extract_strided_slice %190 {offsets = [0, 0], sizes = [1, 32], strides = [1, 1]} : vector<1x96xf32> to vector<1x32xf32>
    %194 = vector.extract_strided_slice %192 {offsets = [0, 0], sizes = [1, 32], strides = [1, 1]} : vector<1x96xf32> to vector<1x32xf32>
    %195 = arith.addf %193, %194 : vector<1x32xf32>
    %196 = arith.negf %195 : vector<1x32xf32>
    %197 = math.exp %196 : vector<1x32xf32>
    %cst_36 = arith.constant 1.000000e+00 : f32
    %198 = vector.broadcast %cst_36 : f32 to vector<1x32xf32>
    %199 = arith.addf %198, %197 : vector<1x32xf32>
    %200 = arith.divf %198, %199 : vector<1x32xf32>
    %201 = vector.extract_strided_slice %190 {offsets = [0, 32], sizes = [1, 32], strides = [1, 1]} : vector<1x96xf32> to vector<1x32xf32>
    %202 = vector.extract_strided_slice %192 {offsets = [0, 32], sizes = [1, 32], strides = [1, 1]} : vector<1x96xf32> to vector<1x32xf32>
    %203 = arith.addf %201, %202 : vector<1x32xf32>
    %204 = arith.negf %203 : vector<1x32xf32>
    %205 = math.exp %204 : vector<1x32xf32>
    %cst_37 = arith.constant 1.000000e+00 : f32
    %206 = vector.broadcast %cst_37 : f32 to vector<1x32xf32>
    %207 = arith.addf %206, %205 : vector<1x32xf32>
    %208 = arith.divf %206, %207 : vector<1x32xf32>
    %209 = vector.extract_strided_slice %190 {offsets = [0, 64], sizes = [1, 32], strides = [1, 1]} : vector<1x96xf32> to vector<1x32xf32>
    %210 = vector.extract_strided_slice %192 {offsets = [0, 64], sizes = [1, 32], strides = [1, 1]} : vector<1x96xf32> to vector<1x32xf32>
    %211 = arith.addf %210, %3 : vector<1x32xf32>
    %212 = arith.mulf %200, %211 : vector<1x32xf32>
    %213 = arith.addf %209, %212 : vector<1x32xf32>
    %214 = math.tanh %213 : vector<1x32xf32>
    %cst_38 = arith.constant 1.000000e+00 : f32
    %215 = vector.broadcast %cst_38 : f32 to vector<1x32xf32>
    %216 = arith.subf %215, %208 : vector<1x32xf32>
    %217 = arith.mulf %216, %214 : vector<1x32xf32>
    %218 = arith.mulf %208, %189 : vector<1x32xf32>
    %219 = arith.addf %217, %218 : vector<1x32xf32>
    %220 = vector.extract_strided_slice %8 {offsets = [7, 0], sizes = [1, 96], strides = [1, 1]} : vector<8x96xf32> to vector<1x96xf32>
    %221 = arith.truncf %219 : vector<1x32xf32> to vector<1x32xbf16>
    %cst_39 = arith.constant dense<0.000000e+00> : vector<1x96xf32>
    %222 = tpu.matmul %221, %2, %cst_39 {dimension_numbers = #tpu.dot_dimension_numbers<[1], [0], [0], [1], [0, 0, 1, 1], [], []>} : vector<1x32xbf16>, vector<32x96xbf16>, vector<1x96xf32> -> vector<1x96xf32>
    %223 = vector.extract_strided_slice %220 {offsets = [0, 0], sizes = [1, 32], strides = [1, 1]} : vector<1x96xf32> to vector<1x32xf32>
    %224 = vector.extract_strided_slice %222 {offsets = [0, 0], sizes = [1, 32], strides = [1, 1]} : vector<1x96xf32> to vector<1x32xf32>
    %225 = arith.addf %223, %224 : vector<1x32xf32>
    %226 = arith.negf %225 : vector<1x32xf32>
    %227 = math.exp %226 : vector<1x32xf32>
    %cst_40 = arith.constant 1.000000e+00 : f32
    %228 = vector.broadcast %cst_40 : f32 to vector<1x32xf32>
    %229 = arith.addf %228, %227 : vector<1x32xf32>
    %230 = arith.divf %228, %229 : vector<1x32xf32>
    %231 = vector.extract_strided_slice %220 {offsets = [0, 32], sizes = [1, 32], strides = [1, 1]} : vector<1x96xf32> to vector<1x32xf32>
    %232 = vector.extract_strided_slice %222 {offsets = [0, 32], sizes = [1, 32], strides = [1, 1]} : vector<1x96xf32> to vector<1x32xf32>
    %233 = arith.addf %231, %232 : vector<1x32xf32>
    %234 = arith.negf %233 : vector<1x32xf32>
    %235 = math.exp %234 : vector<1x32xf32>
    %cst_41 = arith.constant 1.000000e+00 : f32
    %236 = vector.broadcast %cst_41 : f32 to vector<1x32xf32>
    %237 = arith.addf %236, %235 : vector<1x32xf32>
    %238 = arith.divf %236, %237 : vector<1x32xf32>
    %239 = vector.extract_strided_slice %220 {offsets = [0, 64], sizes = [1, 32], strides = [1, 1]} : vector<1x96xf32> to vector<1x32xf32>
    %240 = vector.extract_strided_slice %222 {offsets = [0, 64], sizes = [1, 32], strides = [1, 1]} : vector<1x96xf32> to vector<1x32xf32>
    %241 = arith.addf %240, %3 : vector<1x32xf32>
    %242 = arith.mulf %230, %241 : vector<1x32xf32>
    %243 = arith.addf %239, %242 : vector<1x32xf32>
    %244 = math.tanh %243 : vector<1x32xf32>
    %cst_42 = arith.constant 1.000000e+00 : f32
    %245 = vector.broadcast %cst_42 : f32 to vector<1x32xf32>
    %246 = arith.subf %245, %238 : vector<1x32xf32>
    %247 = arith.mulf %246, %244 : vector<1x32xf32>
    %248 = arith.mulf %238, %219 : vector<1x32xf32>
    %249 = arith.addf %247, %248 : vector<1x32xf32>
    %250 = tpu.concatenate %39, %69, %99, %129, %159, %189, %219, %249 in 0 : vector<1x32xf32>, vector<1x32xf32>, vector<1x32xf32>, vector<1x32xf32>, vector<1x32xf32>, vector<1x32xf32>, vector<1x32xf32>, vector<1x32xf32> -> vector<8x32xf32>
    %251 = arith.truncf %250 : vector<8x32xf32> to vector<8x32xbf16>
    %c0_43 = arith.constant 0 : index
    %c0_44 = arith.constant 0 : index
    %252 = vector.load %arg6[%c0_43, %c0_44] : memref<32x8xbf16, #tpu.memory_space<vmem>>, vector<32x8xbf16>
    %cst_45 = arith.constant dense<0.000000e+00> : vector<8x8xf32>
    %253 = tpu.matmul %251, %252, %cst_45 {dimension_numbers = #tpu.dot_dimension_numbers<[1], [0], [0], [1], [0, 0, 1, 1], [], []>} : vector<8x32xbf16>, vector<32x8xbf16>, vector<8x8xf32> -> vector<8x8xf32>
    %c0_46 = arith.constant 0 : index
    %c0_47 = arith.constant 0 : index
    %254 = vector.load %arg7[%c0_46, %c0_47] : memref<1x8xf32, #tpu.memory_space<vmem>>, vector<1x8xf32>
    %255 = vector.broadcast %254 : vector<1x8xf32> to vector<8x8xf32>
    %256 = arith.addf %253, %255 : vector<8x8xf32>
    %cst_48 = arith.constant dense<0xFF800000> : vector<8xf32>
    %257 = vector.multi_reduction <maximumf>, %256, %cst_48 [1] : vector<8x8xf32> to vector<8xf32>
    %258 = vector.shape_cast %257 : vector<8xf32> to vector<8x1xf32>
    %259 = vector.broadcast %258 : vector<8x1xf32> to vector<8x8xf32>
    %260 = arith.subf %256, %259 : vector<8x8xf32>
    %261 = math.exp %260 : vector<8x8xf32>
    %cst_49 = arith.constant dense<0.000000e+00> : vector<8xf32>
    %262 = vector.multi_reduction <add>, %261, %cst_49 [1] : vector<8x8xf32> to vector<8xf32>
    %263 = vector.shape_cast %262 : vector<8xf32> to vector<8x1xf32>
    %264 = math.log %263 : vector<8x1xf32>
    %265 = arith.addf %264, %258 : vector<8x1xf32>
    %266 = vector.broadcast %265 : vector<8x1xf32> to vector<8x8xf32>
    %267 = arith.subf %256, %266 : vector<8x8xf32>
    %c0_50 = arith.constant 0 : index
    %c0_51 = arith.constant 0 : index
    %c0_52 = arith.constant 0 : index
    %268 = vector.load %arg8[%c0_50, %c0_51, %c0_52] : memref<1x8x8xf32, #tpu.memory_space<vmem>>, vector<1x8x8xf32>
    %269 = vector.shape_cast %268 : vector<1x8x8xf32> to vector<8x8xf32>
    %270 = vector.shape_cast %267 : vector<8x8xf32> to vector<1x8x8xf32>
    tpu.vector_store %arg8[%c0_50, %c0_51, %c0_52], %270 {strides = array<i32>} : memref<1x8x8xf32, #tpu.memory_space<vmem>>, vector<1x8x8xf32>,
    return
  }
  func.func @transform_0(%arg0: i32) -> (i32, i32, i32) {
    %c0_i32 = arith.constant 0 : i32
    %c0_i32_0 = arith.constant 0 : i32
    %c0_i32_1 = arith.constant 0 : i32
    return %arg0, %c0_i32, %c0_i32_0 : i32, i32, i32
  }
  func.func @transform_1(%arg0: i32) -> (i32, i32) {
    %c0_i32 = arith.constant 0 : i32
    %c0_i32_0 = arith.constant 0 : i32
    %c0_i32_1 = arith.constant 0 : i32
    return %c0_i32, %c0_i32_0 : i32, i32
  }
  func.func @transform_2(%arg0: i32) -> (i32, i32) {
    %c0_i32 = arith.constant 0 : i32
    %c0_i32_0 = arith.constant 0 : i32
    %c0_i32_1 = arith.constant 0 : i32
    return %c0_i32, %c0_i32_0 : i32, i32
  }
  func.func @transform_3(%arg0: i32) -> (i32, i32) {
    %c0_i32 = arith.constant 0 : i32
    %c0_i32_0 = arith.constant 0 : i32
    %c0_i32_1 = arith.constant 0 : i32
    return %c0_i32, %c0_i32_0 : i32, i32
  }
  func.func @transform_4(%arg0: i32) -> (i32, i32) {
    %c0_i32 = arith.constant 0 : i32
    %c0_i32_0 = arith.constant 0 : i32
    %c0_i32_1 = arith.constant 0 : i32
    return %c0_i32, %c0_i32_0 : i32, i32
  }
  func.func @transform_5(%arg0: i32) -> (i32, i32) {
    %c0_i32 = arith.constant 0 : i32
    %c0_i32_0 = arith.constant 0 : i32
    %c0_i32_1 = arith.constant 0 : i32
    return %c0_i32, %c0_i32_0 : i32, i32
  }
  func.func @transform_6(%arg0: i32) -> (i32, i32) {
    %c0_i32 = arith.constant 0 : i32
    %c0_i32_0 = arith.constant 0 : i32
    %c0_i32_1 = arith.constant 0 : i32
    return %c0_i32, %c0_i32_0 : i32, i32
  }
  func.func @transform_7(%arg0: i32) -> (i32, i32, i32) {
    %c0_i32 = arith.constant 0 : i32
    %c0_i32_0 = arith.constant 0 : i32
    %c0_i32_1 = arith.constant 0 : i32
    return %arg0, %c0_i32, %c0_i32_0 : i32, i32, i32
  }
}

</mosaic_0001>

<llo_original>
// kernel: tpu_custom_call.1
$region0: #{tpu_custom_call.1}
  #allocation0 [shape = 'u32[]', space=smem, size = 0x4, offset = 0x4, fixed_abs, tag = 'smem constant byte address 0x4 - core index']
  #allocation1 [shape = 'u32[72,128]{1,0:T(1,128)}', space=vmem, size = 0x9000, scoped, tag = 'internal scratch']
  %s0 = inlined_call_operand.hbm [shape: bf16[2,8,32], index: 0, kind: input, shape index: {}]
  %s1 = inlined_call_operand.vmem [shape: bf16[32,96], index: 1, kind: input, shape index: {}]
  %s2 = inlined_call_operand.hbm [shape: bf16[32,96], index: 2, kind: input, shape index: {}]
  %s3 = inlined_call_operand.vmem [shape: f32[1,96], index: 3, kind: input, shape index: {}]
  %s4 = inlined_call_operand.vmem [shape: f32[1,32], index: 4, kind: input, shape index: {}]
  %s5 = inlined_call_operand.vmem [shape: bf16[32,8], index: 5, kind: input, shape index: {}]
  %s6 = inlined_call_operand.vmem [shape: f32[1,8], index: 6, kind: input, shape index: {}]
  %s7 = inlined_call_operand.hbm [shape: f32[2,8,8], index: 7, kind: output, shape index: {}]
  %s8 = sld [smem:[#allocation0]]
  $region69: #{tpu_custom_call.1} parent=0
    _
  %s10 = ssub.s32 1, %s8
  %s11 = scalar_select 0, %s10, %s8
  $region1: #{tpu_custom_call.1} parent=0
    #allocation2 [shape = 'u8[4096]{0}', space=vmem, size = 0x1000, scoped, tag = 'input window, operand 0']
    #allocation3 [shape = 's32[2]{0}', space=sflag, size = 0x8, scoped, tag = 'scoped memory for tpu_custom_call.1']
    #allocation4 [shape = 's32[2]{0}', space=sflag, size = 0x8, scoped, tag = 'scoped memory for tpu_custom_call.1']
    #allocation5 [shape = 'u8[8192]{0}', space=vmem, size = 0x2000, scoped, tag = 'input window, operand 2, single buffered']
    #allocation6 [shape = 's32[1]{0}', space=sflag, size = 0x4, scoped, tag = 'scoped memory for tpu_custom_call.1']
    #allocation7 [shape = 'u8[8192]{0}', space=vmem, size = 0x2000, scoped, tag = 'output window, operand 0']
    %12 = vsyncpa [#allocation3], 0
    %s13 = scalar_lea.sflag [#allocation3], 1
    %14 = vsyncpa %s13, 0
    %15 = vsyncpa [#allocation6], 0
    %16 = vsyncpa [#allocation4], 0
    %s17 = scalar_lea.sflag [#allocation4], 1
    %18 = vsyncpa %s17, 0
    loop: start=0, step=1, limit=4
    $region2: #{tpu_custom_call.1} parent=1 // loop_pre_header
      _
    $region3: #{tpu_custom_call.1} parent=1 // loop_header
      %s20 = sphi 0, %s24
      %p21 = scmp.ge.s32.totalorder %s20, 4
      %s30 = sphi 0, %s32
      %s33 = sphi 0, %s30
      %s34 = sphi 0, %s33
      %s50 = sphi 0, %s34
      %s54 = sphi 0, %s54
      %s56 = sphi 0, %s54
      %s57 = sphi 0, %s56
      %s71 = sphi 0, %s57
      %s75 = sphi 0, %s75
      %s77 = sphi 0, %s75
      %s78 = sphi 0, %s77
      %s92 = sphi 0, %s78
      %s96 = sphi 0, %s96
      %s98 = sphi 0, %s96
      %s99 = sphi 0, %s98
      %s113 = sphi 0, %s99
      %s117 = sphi 0, %s117
      %s119 = sphi 0, %s117
      %s120 = sphi 0, %s119
      %s134 = sphi 0, %s120
      %s138 = sphi 0, %s138
      %s140 = sphi 0, %s138
      %s141 = sphi 0, %s140
      %s155 = sphi 0, %s141
      %s159 = sphi 0, %s159
      %s161 = sphi 0, %s159
      %s162 = sphi 0, %s161
      %s176 = sphi 0, %s162
      %s182 = sphi 0, %s184
      %s185 = sphi 0, %s182
      %s186 = sphi 0, %s185
      %s202 = sphi 0, %s186
    $region4: #{tpu_custom_call.1} parent=1 // loop_header_branch
      %23 = sbr.rel (%p21) target = $region8
    $region5: #{tpu_custom_call.1} parent=1 // loop_body
      %s25 = ssub.s32 %s20, 1
      %s26 = ssub.s32 %s20, 2
      %s27 = sadd.s32 %s20, 1
      %s28 = ssub.s32 %s20, %s27
      %p29 = scmp.eq.s32.totalorder %s28, 0
      %s31 = sadd.s32 %s30, 1
      %s32 = scalar_select %p29, %s30, %s31
      %p35 = pneg %p29
      %p36 = scmp.eq.s32.totalorder %s20, 1
      %p37 = por %p35, %p36
      %p38 = scmp.ne.s32.totalorder %s30, %s33
      %p39 = scmp.eq.s32.totalorder %s20, 0
      %p40 = por %p38, %p39
      %p41 = scmp.ne.s32.totalorder %s30, %s33
      %p42 = scmp.eq.s32.totalorder %s25, 1
      %p43 = por %p41, %p42
      %p44 = scmp.ne.s32.totalorder %s33, %s34
      %p45 = scmp.eq.s32.totalorder %s25, 0
      %p46 = por %p44, %p45
      %p47 = scmp.ne.s32.totalorder %s33, %s34
      %p48 = scmp.eq.s32.totalorder %s26, 1
      %p49 = por %p47, %p48
      %p51 = scmp.ne.s32.totalorder %s34, %s50
      %p52 = scmp.eq.s32.totalorder %s26, 0
      %p53 = por %p51, %p52
      %s55 = sadd.s32 %s54, 1
      %p58 = scmp.eq.s32.totalorder %s20, 1
      %p59 = scmp.ne.s32.totalorder %s54, %s56
      %p60 = scmp.eq.s32.totalorder %s20, 0
      %p61 = por %p59, %p60
      %p62 = scmp.ne.s32.totalorder %s54, %s56
      %p63 = scmp.eq.s32.totalorder %s25, 1
      %p64 = por %p62, %p63
      %p65 = scmp.ne.s32.totalorder %s56, %s57
      %p66 = scmp.eq.s32.totalorder %s25, 0
      %p67 = por %p65, %p66
      %p68 = scmp.ne.s32.totalorder %s56, %s57
      %p69 = scmp.eq.s32.totalorder %s26, 1
      %p70 = por %p68, %p69
      %p72 = scmp.ne.s32.totalorder %s57, %s71
      %p73 = scmp.eq.s32.totalorder %s26, 0
      %p74 = por %p72, %p73
      %s76 = sadd.s32 %s75, 1
      %p79 = scmp.eq.s32.totalorder %s20, 1
      %p80 = scmp.ne.s32.totalorder %s75, %s77
      %p81 = scmp.eq.s32.totalorder %s20, 0
      %p82 = por %p80, %p81
      %p83 = scmp.ne.s32.totalorder %s75, %s77
      %p84 = scmp.eq.s32.totalorder %s25, 1
      %p85 = por %p83, %p84
      %p86 = scmp.ne.s32.totalorder %s77, %s78
      %p87 = scmp.eq.s32.totalorder %s25, 0
      %p88 = por %p86, %p87
      %p89 = scmp.ne.s32.totalorder %s77, %s78
      %p90 = scmp.eq.s32.totalorder %s26, 1
      %p91 = por %p89, %p90
      %p93 = scmp.ne.s32.totalorder %s78, %s92
      %p94 = scmp.eq.s32.totalorder %s26, 0
      %p95 = por %p93, %p94
      %s97 = sadd.s32 %s96, 1
      %p100 = scmp.eq.s32.totalorder %s20, 1
      %p101 = scmp.ne.s32.totalorder %s96, %s98
      %p102 = scmp.eq.s32.totalorder %s20, 0
      %p103 = por %p101, %p102
      %p104 = scmp.ne.s32.totalorder %s96, %s98
      %p105 = scmp.eq.s32.totalorder %s25, 1
      %p106 = por %p104, %p105
      %p107 = scmp.ne.s32.totalorder %s98, %s99
      %p108 = scmp.eq.s32.totalorder %s25, 0
      %p109 = por %p107, %p108
      %p110 = scmp.ne.s32.totalorder %s98, %s99
      %p111 = scmp.eq.s32.totalorder %s26, 1
      %p112 = por %p110, %p111
      %p114 = scmp.ne.s32.totalorder %s99, %s113
      %p115 = scmp.eq.s32.totalorder %s26, 0
      %p116 = por %p114, %p115
      %s118 = sadd.s32 %s117, 1
      %p121 = scmp.eq.s32.totalorder %s20, 1
      %p122 = scmp.ne.s32.totalorder %s117, %s119
      %p123 = scmp.eq.s32.totalorder %s20, 0
      %p124 = por %p122, %p123
      %p125 = scmp.ne.s32.totalorder %s117, %s119
      %p126 = scmp.eq.s32.totalorder %s25, 1
      %p127 = por %p125, %p126
      %p128 = scmp.ne.s32.totalorder %s119, %s120
      %p129 = scmp.eq.s32.totalorder %s25, 0
      %p130 = por %p128, %p129
      %p131 = scmp.ne.s32.totalorder %s119, %s120
      %p132 = scmp.eq.s32.totalorder %s26, 1
      %p133 = por %p131, %p132
      %p135 = scmp.ne.s32.totalorder %s120, %s134
      %p136 = scmp.eq.s32.totalorder %s26, 0
      %p137 = por %p135, %p136
      %s139 = sadd.s32 %s138, 1
      %p142 = scmp.eq.s32.totalorder %s20, 1
      %p143 = scmp.ne.s32.totalorder %s138, %s140
      %p144 = scmp.eq.s32.totalorder %s20, 0
      %p145 = por %p143, %p144
      %p146 = scmp.ne.s32.totalorder %s138, %s140
      %p147 = scmp.eq.s32.totalorder %s25, 1
      %p148 = por %p146, %p147
      %p149 = scmp.ne.s32.totalorder %s140, %s141
      %p150 = scmp.eq.s32.totalorder %s25, 0
      %p151 = por %p149, %p150
      %p152 = scmp.ne.s32.totalorder %s140, %s141
      %p153 = scmp.eq.s32.totalorder %s26, 1
      %p154 = por %p152, %p153
      %p156 = scmp.ne.s32.totalorder %s141, %s155
      %p157 = scmp.eq.s32.totalorder %s26, 0
      %p158 = por %p156, %p157
      %s160 = sadd.s32 %s159, 1
      %p163 = scmp.eq.s32.totalorder %s20, 1
      %p164 = scmp.ne.s32.totalorder %s159, %s161
      %p165 = scmp.eq.s32.totalorder %s20, 0
      %p166 = por %p164, %p165
      %p167 = scmp.ne.s32.totalorder %s159, %s161
      %p168 = scmp.eq.s32.totalorder %s25, 1
      %p169 = por %p167, %p168
      %p170 = scmp.ne.s32.totalorder %s161, %s162
      %p171 = scmp.eq.s32.totalorder %s25, 0
      %p172 = por %p170, %p171
      %p173 = scmp.ne.s32.totalorder %s161, %s162
      %p174 = scmp.eq.s32.totalorder %s26, 1
      %p175 = por %p173, %p174
      %p177 = scmp.ne.s32.totalorder %s162, %s176
      %p178 = scmp.eq.s32.totalorder %s26, 0
      %p179 = por %p177, %p178
      %s180 = ssub.s32 %s20, %s27
      %p181 = scmp.eq.s32.totalorder %s180, 0
      %s183 = sadd.s32 %s182, 1
      %s184 = scalar_select %p181, %s182, %s183
      %p187 = pneg %p181
      %p188 = scmp.eq.s32.totalorder %s20, 1
      %p189 = por %p187, %p188
      %p190 = scmp.ne.s32.totalorder %s182, %s185
      %p191 = scmp.eq.s32.totalorder %s20, 0
      %p192 = por %p190, %p191
      %p193 = scmp.ne.s32.totalorder %s182, %s185
      %p194 = scmp.eq.s32.totalorder %s25, 1
      %p195 = por %p193, %p194
      %p196 = scmp.ne.s32.totalorder %s185, %s186
      %p197 = scmp.eq.s32.totalorder %s25, 0
      %p198 = por %p196, %p197
      %p199 = scmp.ne.s32.totalorder %s185, %s186
      %p200 = scmp.eq.s32.totalorder %s26, 1
      %p201 = por %p199, %p200
      %p203 = scmp.ne.s32.totalorder %s186, %s202
      %p204 = scmp.eq.s32.totalorder %s26, 0
      %p205 = por %p203, %p204
      %p206 = scmp.le.s32.totalorder 1, %s20
      %p207 = scmp.lt.s32.totalorder %s20, 3
      %p208 = pnand %p206, %p207
      %p209 = pneg %p208
      // Predicated region
      $region9: #{tpu_custom_call.1} parent=5 // pred_check
        _
      $region10: #{tpu_custom_call.1} parent=5 // pred_check_branch
        %211 = sbr.rel (%p208) target = $region12
      $region11: #{tpu_custom_call.1} parent=5 // pred_region
        %s212 = ssub.s32 %s20, 1
        // Predicated region
        $region13: #{tpu_custom_call.1} parent=11 // pred_check
          %p213 = pneg %p67
        $region14: #{tpu_custom_call.1} parent=11 // pred_check_branch
          %215 = sbr.rel (%p213) target = $region16
        $region15: #{tpu_custom_call.1} parent=11 // pred_region
          _
        $region16: #{tpu_custom_call.1} parent=11 // pred_fallthru
          _
        // Predicated region
        $region17: #{tpu_custom_call.1} parent=11 // pred_check
          %p216 = pneg %p88
        $region18: #{tpu_custom_call.1} parent=11 // pred_check_branch
          %218 = sbr.rel (%p216) target = $region20
        $region19: #{tpu_custom_call.1} parent=11 // pred_region
          %220 = vsyncadd [#allocation6], 0
          %s221 = sshll.u32 %s2, 4
          %s222 = int_to_ptr.hbm [resolvable:$true] %s221
          %s223 = sshll.u32 [#allocation5], 4
          %s224 = int_to_ptr.vmem [resolvable:$true] %s223
          %229 = dma.hbm_to_vmem [thread:$0]  %s222, 256, %s224, [#allocation6], 64, 64, 4
        $region20: #{tpu_custom_call.1} parent=11 // pred_fallthru
          _
        // Predicated region
        $region21: #{tpu_custom_call.1} parent=11 // pred_check
          %p230 = pneg %p109
        $region22: #{tpu_custom_call.1} parent=11 // pred_check_branch
          %232 = sbr.rel (%p230) target = $region24
        $region23: #{tpu_custom_call.1} parent=11 // pred_region
          _
        $region24: #{tpu_custom_call.1} parent=11 // pred_fallthru
          _
        // Predicated region
        $region25: #{tpu_custom_call.1} parent=11 // pred_check
          %p233 = pneg %p130
        $region26: #{tpu_custom_call.1} parent=11 // pred_check_branch
          %235 = sbr.rel (%p233) target = $region28
        $region27: #{tpu_custom_call.1} parent=11 // pred_region
          _
        $region28: #{tpu_custom_call.1} parent=11 // pred_fallthru
          _
        // Predicated region
        $region29: #{tpu_custom_call.1} parent=11 // pred_check
          %p236 = pneg %p151
        $region30: #{tpu_custom_call.1} parent=11 // pred_check_branch
          %238 = sbr.rel (%p236) target = $region32
        $region31: #{tpu_custom_call.1} parent=11 // pred_region
          _
        $region32: #{tpu_custom_call.1} parent=11 // pred_fallthru
          _
        // Predicated region
        $region33: #{tpu_custom_call.1} parent=11 // pred_check
          %p239 = pneg %p172
        $region34: #{tpu_custom_call.1} parent=11 // pred_check_branch
          %241 = sbr.rel (%p239) target = $region36
        $region35: #{tpu_custom_call.1} parent=11 // pred_region
          _
        $region36: #{tpu_custom_call.1} parent=11 // pred_fallthru
          _
      $region12: #{tpu_custom_call.1} parent=5 // pred_fallthru
        _
      %p242 = scmp.lt.s32.totalorder %s20, 2
      // Predicated region
      $region37: #{tpu_custom_call.1} parent=5 // pred_check
        %p243 = pneg %p242
      $region38: #{tpu_custom_call.1} parent=5 // pred_check_branch
        %245 = sbr.rel (%p243) target = $region40
      $region39: #{tpu_custom_call.1} parent=5 // pred_region
        // Predicated region
        $region41: #{tpu_custom_call.1} parent=39 // pred_check
          %p246 = pneg %p40
        $region42: #{tpu_custom_call.1} parent=39 // pred_check_branch
          %248 = sbr.rel (%p246) target = $region44
        $region43: #{tpu_custom_call.1} parent=39 // pred_region
          %s249 = sand.u32 %s30, 1
          %s250 = scalar_lea.sflag [#allocation3], %s249
          %s251 = sand.u32 %s30, 1
          %s252 = smul.addr %s251, 4
          %s253 = scalar_lea.vmem [#allocation2], %s252
          %255 = vsyncadd %s250, 0
          %s256 = smul.addr %s20, 4
          %s257 = scalar_lea.hbm %s0, %s256
          %s259 = sshll.u32 %s257, 4
          %s260 = int_to_ptr.hbm [resolvable:$true] %s259
          %s261 = sshll.u32 %s253, 4
          %s262 = int_to_ptr.vmem [resolvable:$true] %s261
          %264 = dma.hbm_to_vmem [thread:$0]  %s260, 64, %s262, %s250
        $region44: #{tpu_custom_call.1} parent=39 // pred_fallthru
          _
      $region40: #{tpu_custom_call.1} parent=5 // pred_fallthru
        _
      %p265 = scmp.le.s32.totalorder 1, %s20
      %p266 = scmp.lt.s32.totalorder %s20, 3
      %p267 = pnand %p265, %p266
      %p268 = pneg %p267
      // Predicated region
      $region45: #{tpu_custom_call.1} parent=5 // pred_check
        _
      $region46: #{tpu_custom_call.1} parent=5 // pred_check_branch
        %270 = sbr.rel (%p267) target = $region48
      $region47: #{tpu_custom_call.1} parent=5 // pred_region
        %s271 = ssub.s32 %s20, 1
        %s272 = sand.u32 %s33, 1
        %s273 = scalar_lea.sflag [#allocation3], %s272
        %s274 = sand.u32 %s33, 1
        %s275 = smul.addr %s274, 4
        %s276 = scalar_lea.vmem [#allocation2], %s275
        // Predicated region
        $region49: #{tpu_custom_call.1} parent=47 // pred_check
          %p277 = pneg %p46
        $region50: #{tpu_custom_call.1} parent=47 // pred_check_branch
          %279 = sbr.rel (%p277) target = $region52
        $region51: #{tpu_custom_call.1} parent=47 // pred_region
          %281 = dma.done %s273, 64
        $region52: #{tpu_custom_call.1} parent=47 // pred_fallthru
          _
        // Predicated region
        $region53: #{tpu_custom_call.1} parent=47 // pred_check
          %p282 = pneg %p88
        $region54: #{tpu_custom_call.1} parent=47 // pred_check_branch
          %284 = sbr.rel (%p282) target = $region56
        $region55: #{tpu_custom_call.1} parent=47 // pred_region
          %286 = dma.done [#allocation6], 256
        $region56: #{tpu_custom_call.1} parent=47 // pred_fallthru
          _
        %s287 = sand.u32 %s33, 1
        %s288 = scalar_lea.sflag [#allocation3], %s287
        %s289 = sand.u32 %s33, 1
        %s290 = smul.addr %s289, 4
        %s291 = scalar_lea.vmem [#allocation2], %s290
        %p292 = pneg %p46
        %p293 = pneg %p43
        %p294 = pneg %p67
        %p295 = pneg %p64
        %p296 = pneg %p88
        %p297 = pneg %p85
        %p298 = pneg %p109
        %p299 = pneg %p106
        %p300 = pneg %p130
        %p301 = pneg %p127
        %p302 = pneg %p151
        %p303 = pneg %p148
        %p304 = pneg %p172
        %p305 = pneg %p169
        %p306 = pneg %p198
        %p307 = pneg %p195
        %s308 = sand.u32 %s185, 1
        %s309 = scalar_lea.sflag [#allocation4], %s308
        %s310 = sand.u32 %s185, 1
        %s311 = smul.addr %s310, 8
        %s312 = scalar_lea.vmem [#allocation7], %s311
        %v314 = vld [vmem:[%s276] sm:$0xf]
        %v315 = vld [vmem:[#allocation5] sm:$0xf]
        %v316 = vld [vmem:[#allocation5 + $0x4] sm:$0xf]
        %v317 = vld [vmem:[#allocation5 + $0x8] sm:$0xf]
        %v318 = vld [vmem:[#allocation5 + $0xc] sm:$0xf]
        %v319 = vld [vmem:[%s4] sm:$0x1]
        %v320 = vld [vmem:[%s1] sm:$0xf]
        %v321 = vld [vmem:[%s1 + $0x4] sm:$0xf]
        %v322 = vld [vmem:[%s1 + $0x8] sm:$0xf]
        %v323 = vld [vmem:[%s1 + $0xc] sm:$0xf]
        %v324 = vld [vmem:[%s3] sm:$0x1]
        %v326 = vperm.slane %v324, 0
        %v332 = vunpack.c.l.b16 %v320
        %v333 = vunpack.c.l.b16 %v321
        %v334 = vunpack.c.l.b16 %v322
        %v335 = vunpack.c.l.b16 %v323
        %v336 = vpack.c.b16 %v333, %v332
        %v337 = vpack.c.b16 %v335, %v334
        %vm340 = vcmask 261120
        %v342 = vsel %vm340, %v314, 0
        %344 = vmatpush.bf16.msra.mxu0 0
        %345 = vmatpush.bf16.msra.mxu0 0
        %346 = vmatpush.bf16.msra.mxu0 0
        %347 = vmatpush.bf16.msra.mxu0 0
        %348 = vmatpush.bf16.msra.mxu0 0
        %349 = vmatpush.bf16.msra.mxu0 0
        %350 = vmatpush.bf16.msra.mxu0 %v337
        %351 = vmatpush.bf16.msra.mxu0 %v336
        %352 = vmatmul.bf16.gmra.mxu0 %v342
        %v353 = vpop.f32.mrf.mxu0
        %v354 = vadd.f32 %v326, %v353
        %v355 = vpop.f32.mrf.mxu0
        %356 = vdwg.mxu0
        %v361 = vunpack.c.l.b16 %v315
        %v362 = vunpack.c.l.b16 %v316
        %v363 = vunpack.c.l.b16 %v317
        %v364 = vunpack.c.l.b16 %v318
        %v365 = vpack.c.b16 %v362, %v361
        %v366 = vpack.c.b16 %v364, %v363
        %v370 = vsel %vm340, 0, 0
        %372 = vmatpush.bf16.msra.mxu0 0
        %373 = vmatpush.bf16.msra.mxu0 0
        %374 = vmatpush.bf16.msra.mxu0 0
        %375 = vmatpush.bf16.msra.mxu0 0
        %376 = vmatpush.bf16.msra.mxu0 0
        %377 = vmatpush.bf16.msra.mxu0 0
        %378 = vmatpush.bf16.msra.mxu0 %v366
        %379 = vmatpush.bf16.msra.mxu0 %v365
        %380 = vmatmul.bf16.gmra.mxu0 %v370
        %v381 = vpop.f32.mrf.mxu0
        %v382 = vadd.f32 0.0, %v381
        %v383 = vpop.f32.mrf.mxu0
        %384 = vdwg.mxu0
        %v385 = vadd.f32 %v354, %v382
        %v386 = vxor.u32 %v385, 2147483648
        %v387 = vmul.f32 %v386, 1.442695
        %v388 = vpow.pop %v387
        %v389 = vadd.f32 %v388, 1.0
        %v390 = vrcp.pop %v389
        %v391 = vmul.f32 %v389, %v390
        %v392 = vsub.f32 1.0, %v391
        %v393 = vmul.f32 %v390, %v392
        %v394 = vadd.f32 %v390, %v393
        %vm395 = vweird.f32 %v389
        %vm396 = vweird.f32 %v390
        %vm397 = vmor %vm395, %vm396
        %v398 = vsel %vm397, %v390, %v394
        %v399 = vand.u32 2147483647, %v389
        %vm400 = vcmp.eq.f32.partialorder %v399, 8.507059e+37
        %v401 = vand.u32 %v389, 2147483648
        %v402 = vor.u32 1.1754944e-38, %v401
        %v403 = vsel %vm400, %v402, %v398
        %v404 = vmul.f32 1.0, %v403
        %v406 = vperm.slane %v319, 0
        %407 = vrot.lane.b32.xlu0 %v406, 64
        %v408 = vpop.permute.xlu0 %407
        %v410 = vadd.f32 %v382, %v408
        %412 = vrot.lane.b32.xlu0 %v410, 64
        %v413 = vpop.permute.xlu0 %412
        %v415 = vmul.f32 %v404, %v413
        %417 = vrot.lane.b32.xlu0 %v415, 64
        %v418 = vpop.permute.xlu0 %417
        %v420 = vadd.f32 %v354, %v418
        %v421 = vtanh.pop %v420
        %v422 = vsub.f32 1.0, %v404
        %424 = vrot.lane.b32.xlu0 %v421, 96
        %v425 = vpop.permute.xlu0 %424
        %v427 = vmul.f32 %v422, %v425
        %v428 = vmul.f32 %v404, 0.0
        %v429 = vadd.f32 %v427, %v428
        %v430 = vpack.c.bf16 %v429, %v429
        %432 = vrot.lane.b32.xlu0 %v430, 96
        %v433 = vpop.permute.xlu0 %432
        %v435 = vsel %vm340, %v433, 0
        %437 = vmatpush.bf16.msra.mxu0 0
        %438 = vmatpush.bf16.msra.mxu0 0
        %439 = vmatpush.bf16.msra.mxu0 0
        %440 = vmatpush.bf16.msra.mxu0 0
        %441 = vmatpush.bf16.msra.mxu0 0
        %442 = vmatpush.bf16.msra.mxu0 0
        %443 = vmatpush.bf16.msra.mxu0 %v366
        %444 = vmatpush.bf16.msra.mxu0 %v365
        %445 = vmatmul.bf16.gmra.mxu0 %v435
        %v446 = vpop.f32.mrf.mxu0
        %v447 = vadd.f32 0.0, %v446
        %v448 = vpop.f32.mrf.mxu0
        %449 = vdwg.mxu0
        %v451 = vrot.slane %v447, 7
        %v453 = vadd.f32 %v354, %v451
        %v454 = vxor.u32 %v453, 2147483648
        %v455 = vmul.f32 %v454, 1.442695
        %v456 = vpow.pop %v455
        %v457 = vadd.f32 %v456, 1.0
        %v458 = vrcp.pop %v457
        %v459 = vmul.f32 %v457, %v458
        %v460 = vsub.f32 1.0, %v459
        %v461 = vmul.f32 %v458, %v460
        %v462 = vadd.f32 %v458, %v461
        %vm463 = vweird.f32 %v457
        %vm464 = vweird.f32 %v458
        %vm465 = vmor %vm463, %vm464
        %v466 = vsel %vm465, %v458, %v462
        %v467 = vand.u32 2147483647, %v457
        %vm468 = vcmp.eq.f32.partialorder %v467, 8.507059e+37
        %v469 = vand.u32 %v457, 2147483648
        %v470 = vor.u32 1.1754944e-38, %v469
        %v471 = vsel %vm468, %v470, %v466
        %v472 = vmul.f32 1.0, %v471
        %v473 = vadd.f32 %v447, %v408
        %v475 = vrot.slane %v473, 7
        %476 = vrot.lane.b32.xlu0 %v475, 64
        %v477 = vpop.permute.xlu0 %476
        %v479 = vmul.f32 %v472, %v477
        %481 = vrot.lane.b32.xlu0 %v479, 64
        %v482 = vpop.permute.xlu0 %481
        %v484 = vadd.f32 %v354, %v482
        %v485 = vtanh.pop %v484
        %v486 = vsub.f32 1.0, %v472
        %488 = vrot.lane.b32.xlu0 %v485, 96
        %v489 = vpop.permute.xlu0 %488
        %v491 = vmul.f32 %v486, %v489
        %v493 = vrot.slane %v429, 7
        %v495 = vmul.f32 %v472, %v493
        %v496 = vadd.f32 %v491, %v495
        %v497 = vpack.c.bf16 %v496, %v496
        %v499 = vshrl.u32 %v497, 16
        %501 = vrot.lane.b32.xlu0 %v499, 96
        %v502 = vpop.permute.xlu0 %501
        %v504 = vsel %vm340, %v502, 0
        %506 = vmatpush.bf16.msra.mxu0 0
        %507 = vmatpush.bf16.msra.mxu0 0
        %508 = vmatpush.bf16.msra.mxu0 0
        %509 = vmatpush.bf16.msra.mxu0 0
        %510 = vmatpush.bf16.msra.mxu0 0
        %511 = vmatpush.bf16.msra.mxu0 0
        %512 = vmatpush.bf16.msra.mxu0 %v366
        %513 = vmatpush.bf16.msra.mxu0 %v365
        %514 = vmatmul.bf16.gmra.mxu0 %v504
        %v515 = vpop.f32.mrf.mxu0
        %v516 = vadd.f32 0.0, %v515
        %v517 = vpop.f32.mrf.mxu0
        %518 = vdwg.mxu0
        %v520 = vrot.slane %v516, 6
        %v522 = vadd.f32 %v354, %v520
        %v523 = vxor.u32 %v522, 2147483648
        %v524 = vmul.f32 %v523, 1.442695
        %v525 = vpow.pop %v524
        %v526 = vadd.f32 %v525, 1.0
        %v527 = vrcp.pop %v526
        %v528 = vmul.f32 %v526, %v527
        %v529 = vsub.f32 1.0, %v528
        %v530 = vmul.f32 %v527, %v529
        %v531 = vadd.f32 %v527, %v530
        %vm532 = vweird.f32 %v526
        %vm533 = vweird.f32 %v527
        %vm534 = vmor %vm532, %vm533
        %v535 = vsel %vm534, %v527, %v531
        %v536 = vand.u32 2147483647, %v526
        %vm537 = vcmp.eq.f32.partialorder %v536, 8.507059e+37
        %v538 = vand.u32 %v526, 2147483648
        %v539 = vor.u32 1.1754944e-38, %v538
        %v540 = vsel %vm537, %v539, %v535
        %v541 = vmul.f32 1.0, %v540
        %v542 = vadd.f32 %v516, %v408
        %v544 = vrot.slane %v542, 6
        %545 = vrot.lane.b32.xlu0 %v544, 64
        %v546 = vpop.permute.xlu0 %545
        %v548 = vmul.f32 %v541, %v546
        %550 = vrot.lane.b32.xlu0 %v548, 64
        %v551 = vpop.permute.xlu0 %550
        %v553 = vadd.f32 %v354, %v551
        %v554 = vtanh.pop %v553
        %v555 = vsub.f32 1.0, %v541
        %557 = vrot.lane.b32.xlu0 %v554, 96
        %v558 = vpop.permute.xlu0 %557
        %v560 = vmul.f32 %v555, %v558
        %v562 = vrot.slane %v496, 7
        %v564 = vmul.f32 %v541, %v562
        %v565 = vadd.f32 %v560, %v564
        %v566 = vpack.c.bf16 %v565, %v565
        %v568 = vrot.slane %v566, 1
        %569 = vrot.lane.b32.xlu0 %v568, 96
        %v570 = vpop.permute.xlu0 %569
        %v572 = vsel %vm340, %v570, 0
        %574 = vmatpush.bf16.msra.mxu0 0
        %575 = vmatpush.bf16.msra.mxu0 0
        %576 = vmatpush.bf16.msra.mxu0 0
        %577 = vmatpush.bf16.msra.mxu0 0
        %578 = vmatpush.bf16.msra.mxu0 0
        %579 = vmatpush.bf16.msra.mxu0 0
        %580 = vmatpush.bf16.msra.mxu0 %v366
        %581 = vmatpush.bf16.msra.mxu0 %v365
        %582 = vmatmul.bf16.gmra.mxu0 %v572
        %v583 = vpop.f32.mrf.mxu0
        %v584 = vadd.f32 0.0, %v583
        %v585 = vpop.f32.mrf.mxu0
        %586 = vdwg.mxu0
        %v588 = vrot.slane %v584, 5
        %v590 = vadd.f32 %v354, %v588
        %v591 = vxor.u32 %v590, 2147483648
        %v592 = vmul.f32 %v591, 1.442695
        %v593 = vpow.pop %v592
        %v594 = vadd.f32 %v593, 1.0
        %v595 = vrcp.pop %v594
        %v596 = vmul.f32 %v594, %v595
        %v597 = vsub.f32 1.0, %v596
        %v598 = vmul.f32 %v595, %v597
        %v599 = vadd.f32 %v595, %v598
        %vm600 = vweird.f32 %v594
        %vm601 = vweird.f32 %v595
        %vm602 = vmor %vm600, %vm601
        %v603 = vsel %vm602, %v595, %v599
        %v604 = vand.u32 2147483647, %v594
        %vm605 = vcmp.eq.f32.partialorder %v604, 8.507059e+37
        %v606 = vand.u32 %v594, 2147483648
        %v607 = vor.u32 1.1754944e-38, %v606
        %v608 = vsel %vm605, %v607, %v603
        %v609 = vmul.f32 1.0, %v608
        %v610 = vadd.f32 %v584, %v408
        %v612 = vrot.slane %v610, 5
        %613 = vrot.lane.b32.xlu0 %v612, 64
        %v614 = vpop.permute.xlu0 %613
        %v616 = vmul.f32 %v609, %v614
        %618 = vrot.lane.b32.xlu0 %v616, 64
        %v619 = vpop.permute.xlu0 %618
        %v621 = vadd.f32 %v354, %v619
        %v622 = vtanh.pop %v621
        %v623 = vsub.f32 1.0, %v609
        %625 = vrot.lane.b32.xlu0 %v622, 96
        %v626 = vpop.permute.xlu0 %625
        %v628 = vmul.f32 %v623, %v626
        %v630 = vrot.slane %v565, 7
        %v632 = vmul.f32 %v609, %v630
        %v633 = vadd.f32 %v628, %v632
        %v634 = vpack.c.bf16 %v633, %v633
        %v636 = vshrl.u32 %v634, 16
        %v638 = vrot.slane %v636, 1
        %639 = vrot.lane.b32.xlu0 %v638, 96
        %v640 = vpop.permute.xlu0 %639
        %v642 = vsel %vm340, %v640, 0
        %644 = vmatpush.bf16.msra.mxu0 0
        %645 = vmatpush.bf16.msra.mxu0 0
        %646 = vmatpush.bf16.msra.mxu0 0
        %647 = vmatpush.bf16.msra.mxu0 0
        %648 = vmatpush.bf16.msra.mxu0 0
        %649 = vmatpush.bf16.msra.mxu0 0
        %650 = vmatpush.bf16.msra.mxu0 %v366
        %651 = vmatpush.bf16.msra.mxu0 %v365
        %652 = vmatmul.bf16.gmra.mxu0 %v642
        %v653 = vpop.f32.mrf.mxu0
        %v654 = vadd.f32 0.0, %v653
        %v655 = vpop.f32.mrf.mxu0
        %656 = vdwg.mxu0
        %v658 = vrot.slane %v654, 4
        %v660 = vadd.f32 %v354, %v658
        %v661 = vxor.u32 %v660, 2147483648
        %v662 = vmul.f32 %v661, 1.442695
        %v663 = vpow.pop %v662
        %v664 = vadd.f32 %v663, 1.0
        %v665 = vrcp.pop %v664
        %v666 = vmul.f32 %v664, %v665
        %v667 = vsub.f32 1.0, %v666
        %v668 = vmul.f32 %v665, %v667
        %v669 = vadd.f32 %v665, %v668
        %vm670 = vweird.f32 %v664
        %vm671 = vweird.f32 %v665
        %vm672 = vmor %vm670, %vm671
        %v673 = vsel %vm672, %v665, %v669
        %v674 = vand.u32 2147483647, %v664
        %vm675 = vcmp.eq.f32.partialorder %v674, 8.507059e+37
        %v676 = vand.u32 %v664, 2147483648
        %v677 = vor.u32 1.1754944e-38, %v676
        %v678 = vsel %vm675, %v677, %v673
        %v679 = vmul.f32 1.0, %v678
        %v680 = vadd.f32 %v654, %v408
        %v682 = vrot.slane %v680, 4
        %683 = vrot.lane.b32.xlu0 %v682, 64
        %v684 = vpop.permute.xlu0 %683
        %v686 = vmul.f32 %v679, %v684
        %688 = vrot.lane.b32.xlu0 %v686, 64
        %v689 = vpop.permute.xlu0 %688
        %v691 = vadd.f32 %v354, %v689
        %v692 = vtanh.pop %v691
        %v693 = vsub.f32 1.0, %v679
        %695 = vrot.lane.b32.xlu0 %v692, 96
        %v696 = vpop.permute.xlu0 %695
        %v698 = vmul.f32 %v693, %v696
        %v700 = vrot.slane %v633, 7
        %v702 = vmul.f32 %v679, %v700
        %v703 = vadd.f32 %v698, %v702
        %v704 = vpack.c.bf16 %v703, %v703
        %v706 = vrot.slane %v704, 2
        %707 = vrot.lane.b32.xlu0 %v706, 96
        %v708 = vpop.permute.xlu0 %707
        %v710 = vsel %vm340, %v708, 0
        %712 = vmatpush.bf16.msra.mxu0 0
        %713 = vmatpush.bf16.msra.mxu0 0
        %714 = vmatpush.bf16.msra.mxu0 0
        %715 = vmatpush.bf16.msra.mxu0 0
        %716 = vmatpush.bf16.msra.mxu0 0
        %717 = vmatpush.bf16.msra.mxu0 0
        %718 = vmatpush.bf16.msra.mxu0 %v366
        %719 = vmatpush.bf16.msra.mxu0 %v365
        %720 = vmatmul.bf16.gmra.mxu0 %v710
        %v721 = vpop.f32.mrf.mxu0
        %v722 = vadd.f32 0.0, %v721
        %v723 = vpop.f32.mrf.mxu0
        %724 = vdwg.mxu0
        %v726 = vrot.slane %v722, 3
        %v728 = vadd.f32 %v354, %v726
        %v729 = vxor.u32 %v728, 2147483648
        %v730 = vmul.f32 %v729, 1.442695
        %v731 = vpow.pop %v730
        %v732 = vadd.f32 %v731, 1.0
        %v733 = vrcp.pop %v732
        %v734 = vmul.f32 %v732, %v733
        %v735 = vsub.f32 1.0, %v734
        %v736 = vmul.f32 %v733, %v735
        %v737 = vadd.f32 %v733, %v736
        %vm738 = vweird.f32 %v732
        %vm739 = vweird.f32 %v733
        %vm740 = vmor %vm738, %vm739
        %v741 = vsel %vm740, %v733, %v737
        %v742 = vand.u32 2147483647, %v732
        %vm743 = vcmp.eq.f32.partialorder %v742, 8.507059e+37
        %v744 = vand.u32 %v732, 2147483648
        %v745 = vor.u32 1.1754944e-38, %v744
        %v746 = vsel %vm743, %v745, %v741
        %v747 = vmul.f32 1.0, %v746
        %v748 = vadd.f32 %v722, %v408
        %v750 = vrot.slane %v748, 3
        %751 = vrot.lane.b32.xlu0 %v750, 64
        %v752 = vpop.permute.xlu0 %751
        %v754 = vmul.f32 %v747, %v752
        %756 = vrot.lane.b32.xlu0 %v754, 64
        %v757 = vpop.permute.xlu0 %756
        %v759 = vadd.f32 %v354, %v757
        %v760 = vtanh.pop %v759
        %v761 = vsub.f32 1.0, %v747
        %763 = vrot.lane.b32.xlu0 %v760, 96
        %v764 = vpop.permute.xlu0 %763
        %v766 = vmul.f32 %v761, %v764
        %v768 = vrot.slane %v703, 7
        %v770 = vmul.f32 %v747, %v768
        %v771 = vadd.f32 %v766, %v770
        %v772 = vpack.c.bf16 %v771, %v771
        %v774 = vshrl.u32 %v772, 16
        %v776 = vrot.slane %v774, 2
        %777 = vrot.lane.b32.xlu0 %v776, 96
        %v778 = vpop.permute.xlu0 %777
        %v780 = vsel %vm340, %v778, 0
        %782 = vmatpush.bf16.msra.mxu0 0
        %783 = vmatpush.bf16.msra.mxu0 0
        %784 = vmatpush.bf16.msra.mxu0 0
        %785 = vmatpush.bf16.msra.mxu0 0
        %786 = vmatpush.bf16.msra.mxu0 0
        %787 = vmatpush.bf16.msra.mxu0 0
        %788 = vmatpush.bf16.msra.mxu0 %v366
        %789 = vmatpush.bf16.msra.mxu0 %v365
        %790 = vmatmul.bf16.gmra.mxu0 %v780
        %v791 = vpop.f32.mrf.mxu0
        %v792 = vadd.f32 0.0, %v791
        %v793 = vpop.f32.mrf.mxu0
        %794 = vdwg.mxu0
        %v796 = vrot.slane %v792, 2
        %v798 = vadd.f32 %v354, %v796
        %v799 = vxor.u32 %v798, 2147483648
        %v800 = vmul.f32 %v799, 1.442695
        %v801 = vpow.pop %v800
        %v802 = vadd.f32 %v801, 1.0
        %v803 = vrcp.pop %v802
        %v804 = vmul.f32 %v802, %v803
        %v805 = vsub.f32 1.0, %v804
        %v806 = vmul.f32 %v803, %v805
        %v807 = vadd.f32 %v803, %v806
        %vm808 = vweird.f32 %v802
        %vm809 = vweird.f32 %v803
        %vm810 = vmor %vm808, %vm809
        %v811 = vsel %vm810, %v803, %v807
        %v812 = vand.u32 2147483647, %v802
        %vm813 = vcmp.eq.f32.partialorder %v812, 8.507059e+37
        %v814 = vand.u32 %v802, 2147483648
        %v815 = vor.u32 1.1754944e-38, %v814
        %v816 = vsel %vm813, %v815, %v811
        %v817 = vmul.f32 1.0, %v816
        %v818 = vadd.f32 %v792, %v408
        %v820 = vrot.slane %v818, 2
        %821 = vrot.lane.b32.xlu0 %v820, 64
        %v822 = vpop.permute.xlu0 %821
        %v824 = vmul.f32 %v817, %v822
        %826 = vrot.lane.b32.xlu0 %v824, 64
        %v827 = vpop.permute.xlu0 %826
        %v829 = vadd.f32 %v354, %v827
        %v830 = vtanh.pop %v829
        %v831 = vsub.f32 1.0, %v817
        %833 = vrot.lane.b32.xlu0 %v830, 96
        %v834 = vpop.permute.xlu0 %833
        %v836 = vmul.f32 %v831, %v834
        %v838 = vrot.slane %v771, 7
        %v840 = vmul.f32 %v817, %v838
        %v841 = vadd.f32 %v836, %v840
        %v842 = vpack.c.bf16 %v841, %v841
        %v844 = vrot.slane %v842, 3
        %845 = vrot.lane.b32.xlu0 %v844, 96
        %v846 = vpop.permute.xlu0 %845
        %v848 = vsel %vm340, %v846, 0
        %850 = vmatpush.bf16.msra.mxu0 0
        %851 = vmatpush.bf16.msra.mxu0 0
        %852 = vmatpush.bf16.msra.mxu0 0
        %853 = vmatpush.bf16.msra.mxu0 0
        %854 = vmatpush.bf16.msra.mxu0 0
        %855 = vmatpush.bf16.msra.mxu0 0
        %856 = vmatpush.bf16.msra.mxu0 %v366
        %857 = vmatpush.bf16.msra.mxu0 %v365
        %858 = vmatmul.bf16.gmra.mxu0 %v848
        %v859 = vpop.f32.mrf.mxu0
        %v860 = vadd.f32 0.0, %v859
        %v861 = vpop.f32.mrf.mxu0
        %862 = vdwg.mxu0
        %v864 = vrot.slane %v860, 1
        %v866 = vadd.f32 %v354, %v864
        %v867 = vxor.u32 %v866, 2147483648
        %v868 = vmul.f32 %v867, 1.442695
        %v869 = vpow.pop %v868
        %v870 = vadd.f32 %v869, 1.0
        %v871 = vrcp.pop %v870
        %v872 = vmul.f32 %v870, %v871
        %v873 = vsub.f32 1.0, %v872
        %v874 = vmul.f32 %v871, %v873
        %v875 = vadd.f32 %v871, %v874
        %vm876 = vweird.f32 %v870
        %vm877 = vweird.f32 %v871
        %vm878 = vmor %vm876, %vm877
        %v879 = vsel %vm878, %v871, %v875
        %v880 = vand.u32 2147483647, %v870
        %vm881 = vcmp.eq.f32.partialorder %v880, 8.507059e+37
        %v882 = vand.u32 %v870, 2147483648
        %v883 = vor.u32 1.1754944e-38, %v882
        %v884 = vsel %vm881, %v883, %v879
        %v885 = vmul.f32 1.0, %v884
        %v886 = vadd.f32 %v860, %v408
        %v888 = vrot.slane %v886, 1
        %889 = vrot.lane.b32.xlu0 %v888, 64
        %v890 = vpop.permute.xlu0 %889
        %v892 = vmul.f32 %v885, %v890
        %894 = vrot.lane.b32.xlu0 %v892, 64
        %v895 = vpop.permute.xlu0 %894
        %v897 = vadd.f32 %v354, %v895
        %v898 = vtanh.pop %v897
        %v899 = vsub.f32 1.0, %v885
        %901 = vrot.lane.b32.xlu0 %v898, 96
        %v902 = vpop.permute.xlu0 %901
        %v904 = vmul.f32 %v899, %v902
        %v906 = vrot.slane %v841, 7
        %v908 = vmul.f32 %v885, %v906
        %v909 = vadd.f32 %v904, %v908
        %vm910 = vcmask 1040384
        %v911 = vsel %vm910, %v429, %v496
        %vm912 = vcmask 1041408
        %v913 = vsel %vm912, %v911, %v565
        %vm914 = vcmask 1042432
        %v915 = vsel %vm914, %v913, %v633
        %vm916 = vcmask 1043456
        %v917 = vsel %vm916, %v915, %v703
        %vm918 = vcmask 1044480
        %v919 = vsel %vm918, %v917, %v771
        %vm920 = vcmask 1045504
        %v921 = vsel %vm920, %v919, %v841
        %vm922 = vcmask 1046528
        %v923 = vsel %vm922, %v921, %v909
        %v924 = vpack.c.bf16 %v923, %v923
        %v925 = vld [vmem:[%s5] sm:$0xf]
        %v926 = vld [vmem:[%s5 + $0x4] sm:$0xf]
        %v927 = vld [vmem:[%s5 + $0x8] sm:$0xf]
        %v928 = vld [vmem:[%s5 + $0xc] sm:$0xf]
        %v929 = vld [vmem:[%s6] sm:$0x1]
        %v931 = vperm.slane %v929, 0
        %934 = vrot.lane.b32.xlu0 %v924, 96
        %v935 = vpop.permute.xlu0 %934
        %v940 = vunpack.c.l.b16 %v925
        %v941 = vunpack.c.l.b16 %v926
        %v942 = vunpack.c.l.b16 %v927
        %v943 = vunpack.c.l.b16 %v928
        %v944 = vpack.c.b16 %v941, %v940
        %v945 = vpack.c.b16 %v943, %v942
        %v949 = vsel %vm340, %v935, 0
        %951 = vmatpush.bf16.msra.mxu0 0
        %952 = vmatpush.bf16.msra.mxu0 0
        %953 = vmatpush.bf16.msra.mxu0 0
        %954 = vmatpush.bf16.msra.mxu0 0
        %955 = vmatpush.bf16.msra.mxu0 0
        %956 = vmatpush.bf16.msra.mxu0 0
        %957 = vmatpush.bf16.msra.mxu0 %v945
        %958 = vmatpush.bf16.msra.mxu0 %v944
        %959 = vmatmul.bf16.gmra.mxu0 %v949
        %v960 = vpop.f32.mrf.mxu0
        %v961 = vadd.f32 %v931, %v960
        %v962 = vpop.f32.mrf.mxu0
        %963 = vdwg.mxu0
        %vm964 = vcmask 64512
        %v965 = vsel %vm964, %v961, -inf
        %966 = vmax.xlane.f32.xlu0 %v965
        %v967 = vpop.xlane.xlu0 %966
        %v968 = vsub.f32 %v961, %v967
        %v969 = vmul.f32 %v968, 1.442695
        %v970 = vpow.pop %v969
        %v971 = vsel %vm964, %v970, 0.0
        %972 = vadd.xlane.f32.xlu0 %v971
        %v973 = vpop.xlane.xlu0 %972
        %v974 = vlog2.pop %v973
        %v975 = vmul.f32 %v974, 0.6931472
        %v976 = vadd.f32 %v975, %v967
        %v977 = vsub.f32 %v961, %v976
        %978 = vst.msk [vmem:[%s312] sm:$0xff] %vm964, %v977
        %s979 = sand.u32 %s185, 1
        %s980 = scalar_lea.sflag [#allocation4], %s979
        %s981 = sand.u32 %s185, 1
        %s982 = smul.addr %s981, 8
        %s983 = scalar_lea.vmem [#allocation7], %s982
        // Predicated region
        $region57: #{tpu_custom_call.1} parent=47 // pred_check
          %p984 = pneg %p195
        $region58: #{tpu_custom_call.1} parent=47 // pred_check_branch
          %986 = sbr.rel (%p984) target = $region60
        $region59: #{tpu_custom_call.1} parent=47 // pred_region
          %988 = vsyncadd %s980, 0
          %s989 = smul.addr %s25, 8
          %s990 = scalar_lea.hbm %s7, %s989
          %s992 = sshll.u32 %s983, 4
          %s993 = int_to_ptr.vmem [resolvable:$true] %s992
          %s994 = sshll.u32 %s990, 4
          %s995 = int_to_ptr.hbm [resolvable:$true] %s994
          %997 = dma.vmem_to_hbm [thread:$0]  %s993, 128, %s995, %s980
        $region60: #{tpu_custom_call.1} parent=47 // pred_fallthru
          _
      $region48: #{tpu_custom_call.1} parent=5 // pred_fallthru
        _
      %p998 = scmp.le.s32.totalorder 2, %s20
      // Predicated region
      $region61: #{tpu_custom_call.1} parent=5 // pred_check
        %p999 = pneg %p998
      $region62: #{tpu_custom_call.1} parent=5 // pred_check_branch
        %1001 = sbr.rel (%p999) target = $region64
      $region63: #{tpu_custom_call.1} parent=5 // pred_region
        %s1002 = ssub.s32 %s20, 2
        // Predicated region
        $region65: #{tpu_custom_call.1} parent=63 // pred_check
          %p1003 = pneg %p201
        $region66: #{tpu_custom_call.1} parent=63 // pred_check_branch
          %1005 = sbr.rel (%p1003) target = $region68
        $region67: #{tpu_custom_call.1} parent=63 // pred_region
          %s1006 = sand.u32 %s186, 1
          %s1007 = scalar_lea.sflag [#allocation4], %s1006
          %s1008 = sand.u32 %s186, 1
          %s1009 = smul.addr %s1008, 8
          %s1010 = scalar_lea.vmem [#allocation7], %s1009
          %1012 = dma.done %s1007, 128
        $region68: #{tpu_custom_call.1} parent=63 // pred_fallthru
          _
      $region64: #{tpu_custom_call.1} parent=5 // pred_fallthru
        _
    $region6: #{tpu_custom_call.1} parent=1 // loop_footer
      %s24 = sadd.s32 1, %s20
    $region7: #{tpu_custom_call.1} parent=1 // loop_footer_branch
      %19 = sbr.rel target = $region3
    $region8: #{tpu_custom_call.1} parent=1 // loop_exit
      _
    %1013 = vsyncpa [#allocation3], 1
    %s1014 = scalar_lea.sflag [#allocation3], 1
    %1015 = vsyncpa %s1014, 1
    %1016 = vsyncpa [#allocation6], 1
    %1017 = vsyncpa [#allocation4], 1
    %s1018 = scalar_lea.sflag [#allocation4], 1
    %1019 = vsyncpa %s1018, 1

</llo_original>
